<compile_context>
chip_gen: v5e
topology: v5e:2x2
jax: 0.10.0
libtpu: 0.0.40
codegen_flags: <defaults>
</compile_context>

<pallas_src>
import functools

import jax
import jax.numpy as jnp
from jax.experimental import pallas as pl
from jax.experimental.pallas import tpu as pltpu

LANE = 128       # vreg lane width / MXU-friendly last-dim multiple
SUBLANE = 8
# TODO(synk): on v6e/v7x (2x256x256 MXU) round hidden/contraction dims up to
# 256 once emb_dim is nontrivial; 128 already saturates v5e's 4x128x128 MXU and
# avoids pure waste at the small dims used here.


def _round_up(v, m):
    return ((v + m - 1) // m) * m


def _pad2(x, rows, cols):
    r, c = x.shape
    return jnp.pad(x, ((0, rows - r), (0, cols - c)))


def _nbytes(v):
    return int(v.size) * v.dtype.itemsize


# ----------------------------------------------------------------------------
# Fused Pallas kernel: grid axis = GIN layer; pool + classifier on last step.
# ----------------------------------------------------------------------------
def ginnet_kernel(a_ref, x_ref, p_ref, w1_ref, b1_ref, w2_ref, b2_ref,
                  wc_ref, bc_ref, o_ref, h_ref, *, emb_cols):
    """One grid step == one GIN layer; h lives in VMEM scratch across steps.

    layer l:   agg = (A + I) @ h                   (eps=0 self term folded in A)
               z   = relu(agg @ W1[l] + b1[l])     (inner-MLP BN folded in W1/b1)
               z   = z @ W2[l] + b2[l]             (encoder BN folded in W2/b2)
               h   = relu(z) if l != L-1 else z    (eval dropout = identity)
    last step: out = (P @ h) @ Wc + bc             (mean pool + classifier)

    Matmul inputs are bf16 with f32 MXU accumulation; epilogues are f32.
    """
    l = pl.program_id(0)
    last = pl.num_programs(0) - 1

    @pl.when(l == 0)
    def _():
        h_ref[...] = x_ref[...]

    a = a_ref[...]                                   # bf16 [Np, Np]
    h = h_ref[...]                                   # bf16 [Np, Dp]

    # (1+eps)*x + sum_{j->i} x_j  ==  (A + I) @ h
    agg = jnp.dot(a, h, preferred_element_type=jnp.float32)
    z = jnp.dot(agg.astype(jnp.bfloat16), w1_ref[...],
                preferred_element_type=jnp.float32) + b1_ref[...]
    z = jnp.maximum(z, 0.0)                          # inner-MLP ReLU
    z = jnp.dot(z.astype(jnp.bfloat16), w2_ref[...],
                preferred_element_type=jnp.float32) + b2_ref[...]

    # Encoder ReLU on every layer except the last.
    h_next = jnp.where(l == last, z, jnp.maximum(z, 0.0)).astype(jnp.bfloat16)
    if emb_cols == h_ref.shape[1]:
        h_ref[...] = h_next
    else:
        # Stale columns beyond emb_cols only ever hit zero rows of W1 -> exact.
        h_ref[:, :emb_cols] = h_next

    @pl.when(l == last)
    def _():
        # Mean pool in bf16 (f32 accumulation), tiny f32 classifier tail.
        hg = jnp.dot(p_ref[...], z.astype(jnp.bfloat16),
                     preferred_element_type=jnp.float32)
        o_ref[...] = jnp.dot(hg, wc_ref[...],
                             preferred_element_type=jnp.float32) + bc_ref[...]


def _vmem_cap_bytes():
    # Generation-aware VMEM capacity (v7x: 64 MiB/TC, v5e/v6e: 128 MiB).
    try:
        cap = int(getattr(pltpu.get_tpu_info(), "vmem_capacity_bytes", 0))
        if cap > 0:
            return cap
    except Exception:
        pass
    return 64 << 20    # conservative fallback (smallest generation)


def run_ginnet(a, x, p, w1, b1, w2, b2, wc, bc, *, g_pad, c_pad):
    num_layer = int(w1.shape[0])
    n_pad, dmax_pad = x.shape
    h_pad = int(w1.shape[2])
    e_pad = int(w2.shape[2])

    # Real resident footprint + double-buffered per-layer weight stream, with
    # headroom, capped at 75% of this generation's physical VMEM.
    resident = (_nbytes(a) + _nbytes(x) + _nbytes(p) + _nbytes(wc) + _nbytes(bc)
                + n_pad * dmax_pad * 2          # h scratch (bf16)
                + g_pad * c_pad * 4)            # output
    streamed = 2 * (_nbytes(w1) + _nbytes(b1) + _nbytes(w2) + _nbytes(b2)) // num_layer
    vmem_limit = int(min(max(2 * (resident + streamed) + (4 << 20), 8 << 20),
                         (_vmem_cap_bytes() * 3) // 4))

    flops = (2 * num_layer * (n_pad * n_pad * dmax_pad
                              + n_pad * dmax_pad * h_pad
                              + n_pad * h_pad * e_pad)
             + 2 * (g_pad * n_pad * e_pad + g_pad * e_pad * c_pad))
    bytes_accessed = (_nbytes(a) + _nbytes(x) + _nbytes(p) + _nbytes(w1)
                      + _nbytes(b1) + _nbytes(w2) + _nbytes(b2) + _nbytes(wc)
                      + _nbytes(bc) + g_pad * c_pad * 4)

    grid_spec = pltpu.PrefetchScalarGridSpec(
        num_scalar_prefetch=0,
        grid=(num_layer,),
        in_specs=[
            # VMEM-resident across all layer steps (constant block index).
            pl.BlockSpec((n_pad, n_pad), lambda l: (0, 0)),          # A'
            pl.BlockSpec((n_pad, dmax_pad), lambda l: (0, 0)),       # x
            pl.BlockSpec((g_pad, n_pad), lambda l: (0, 0)),          # P
            # Per-layer weight stream (double-buffered by the pipeline).
            pl.BlockSpec((pl.Squeezed(), dmax_pad, h_pad), lambda l: (l, 0, 0)),
            pl.BlockSpec((pl.Squeezed(), 1, h_pad), lambda l: (l, 0, 0)),
            pl.BlockSpec((pl.Squeezed(), h_pad, e_pad), lambda l: (l, 0, 0)),
            pl.BlockSpec((pl.Squeezed(), 1, e_pad), lambda l: (l, 0, 0)),
            # Classifier, resident.
            pl.BlockSpec((e_pad, c_pad), lambda l: (0, 0)),
            pl.BlockSpec((1, c_pad), lambda l: (0, 0)),
        ],
        out_specs=pl.BlockSpec((g_pad, c_pad), lambda l: (0, 0)),
        scratch_shapes=[pltpu.VMEM((n_pad, dmax_pad), jnp.bfloat16)],  # h
    )
    return pl.pallas_call(
        functools.partial(ginnet_kernel, emb_cols=e_pad),
        out_shape=jax.ShapeDtypeStruct((g_pad, c_pad), jnp.float32),
        grid_spec=grid_spec,
        compiler_params=pltpu.CompilerParams(
            dimension_semantics=("arbitrary",),     # layers are sequential
            vmem_limit_bytes=vmem_limit),
        cost_estimate=pl.CostEstimate(flops=flops, transcendentals=0,
                                      bytes_accessed=bytes_accessed),
    )(a, x, p, w1, b1, w2, b2, wc, bc)


# ----------------------------------------------------------------------------
# Parameter construction (deterministic, synthetic) with BN/bias folding and
# lane padding done once, offline; weights stacked [L, ...] for layer streaming.
# ----------------------------------------------------------------------------
def make_params(key, num_layer, in_dim, emb_dim, num_class):
    bn_eps = 1e-5
    # Eval-mode BN with default init (gamma=1, beta=0, mean=0, var=1) folds into
    # the preceding Linear as W' = W/sqrt(1+eps), b' = b/sqrt(1+eps).
    # TODO(synk): for real trained stats fold W' = W*gamma/sqrt(var+eps),
    #             b' = (b-mean)*gamma/sqrt(var+eps) + beta instead.
    inv = 1.0 / float(jnp.sqrt(jnp.float32(1.0 + bn_eps)))

    f_pad = _round_up(in_dim, LANE)
    e_pad = _round_up(emb_dim, LANE)
    h_pad = _round_up(2 * emb_dim, LANE)
    c_pad = _round_up(num_class, LANE)
    dmax_pad = max(f_pad, e_pad)

    w1s, b1s, w2s, b2s = [], [], [], []
    for layer in range(num_layer):
        din = in_dim if layer == 0 else emb_dim
        key, k1, k2, k3, k4 = jax.random.split(key, 5)
        w1 = jax.random.normal(k1, (din, 2 * emb_dim), jnp.float32) * 0.1
        b1 = jax.random.normal(k2, (1, 2 * emb_dim), jnp.float32) * 0.1
        w2 = jax.random.normal(k3, (2 * emb_dim, emb_dim), jnp.float32) * 0.1
        b2 = jax.random.normal(k4, (1, emb_dim), jnp.float32) * 0.1
        # Fold inner-MLP BN into W1/b1 and the encoder BN into W2/b2.
        w1s.append(_pad2(w1 * inv, dmax_pad, h_pad).astype(jnp.bfloat16))
        b1s.append(_pad2(b1 * inv, 1, h_pad))
        w2s.append(_pad2(w2 * inv, h_pad, e_pad).astype(jnp.bfloat16))
        b2s.append(_pad2(b2 * inv, 1, e_pad))

    w1 = jnp.stack(w1s)          # [L, dmax_pad, h_pad]  bf16
    b1 = jnp.stack(b1s)          # [L, 1, h_pad]         f32
    w2 = jnp.stack(w2s)          # [L, h_pad, e_pad]     bf16
    b2 = jnp.stack(b2s)          # [L, 1, e_pad]         f32

    key, kc1, kc2 = jax.random.split(key, 3)
    wc = _pad2(jax.random.normal(kc1, (emb_dim, num_class), jnp.float32) * 0.1,
               e_pad, c_pad)     # tiny classifier stays f32
    bc = _pad2(jax.random.normal(kc2, (1, num_class), jnp.float32) * 0.1,
               1, c_pad)
    return w1, b1, w2, b2, wc, bc


# ----------------------------------------------------------------------------
# GINNet forward: scatter glue in JAX, entire hot path in one Pallas kernel.
# ----------------------------------------------------------------------------
def ginnet_forward(x, edge_index, batch, params, num_graphs, num_class):
    w1, b1, w2, b2, wc, bc = params
    n = x.shape[0]
    dmax_pad = int(w1.shape[1])
    c_pad = int(wc.shape[1])
    n_pad = _round_up(n, LANE)              # N is both a sublane and a lane dim
    g_pad = _round_up(num_graphs, SUBLANE)

    # Dense adjacency A'[dst, src] += 1 per edge (PyG source->target flow),
    # built DIRECTLY at padded shape in bf16, with the GIN self term (eps=0)
    # folded in as the identity diagonal.  bf16 is exact for small integer
    # edge multiplicities.
    src, dst = edge_index[0], edge_index[1]
    a = jnp.zeros((n_pad, n_pad), jnp.bfloat16).at[dst, src].add(1.0)
    a = a + jnp.eye(n_pad, dtype=jnp.bfloat16)

    x_p = _pad2(x, n_pad, dmax_pad).astype(jnp.bfloat16)

    # Global-mean-pool matrix P[g, i] = (batch[i] == g) / |graph g|, bf16.
    onehot = (batch[None, :] == jnp.arange(num_graphs)[:, None]).astype(jnp.float32)
    counts = jnp.maximum(onehot.sum(axis=1, keepdims=True), 1.0)
    p = _pad2(onehot / counts, g_pad, n_pad).astype(jnp.bfloat16)

    logits_padded = run_ginnet(a, x_p, p, w1, b1, w2, b2, wc, bc,
                               g_pad=g_pad, c_pad=c_pad)
    return logits_padded[:num_graphs, :num_class]


# ----------------------------------------------------------------------------
if __name__ == "__main__":
    num_layer = 3
    in_dim = 8
    emb_dim = 32
    num_class = 4
    num_graphs = 8            # pack graphs so real nodes fill the 128-node tile
    nodes_per_graph = 16
    edges_per_graph = 40
    num_nodes = num_graphs * nodes_per_graph          # = 128

    key = jax.random.PRNGKey(0)
    key, kx, ke = jax.random.split(key, 3)

    x = jax.random.normal(kx, (num_nodes, in_dim), jnp.float32)

    # Block-diagonal edge set: edges never cross graph boundaries.
    e = jax.random.randint(ke, (2, num_graphs, edges_per_graph),
                           0, nodes_per_graph, jnp.int32)
    offs = (jnp.arange(num_graphs, dtype=jnp.int32) * nodes_per_graph)[None, :, None]
    edge_index = (e + offs).reshape(2, num_graphs * edges_per_graph)
    batch = jnp.repeat(jnp.arange(num_graphs, dtype=jnp.int32), nodes_per_graph)

    params = make_params(key, num_layer, in_dim, emb_dim, num_class)

    logits = ginnet_forward(x, edge_index, batch, params, num_graphs, num_class)
    logits = jax.block_until_ready(logits)
    assert logits.shape == (num_graphs, num_class)
    assert bool(jnp.all(jnp.isfinite(logits)))
    print("KERNEL_OK")
</pallas_src>

<mosaic_0001>
module attributes {stable_mosaic.version = 11 : i64} {
  func.func @ginnet_kernel(%arg0: i32, %arg1: memref<128x128xbf16, #tpu.memory_space<vmem>>, %arg2: memref<128x128xbf16, #tpu.memory_space<vmem>>, %arg3: memref<8x128xbf16, #tpu.memory_space<vmem>>, %arg4: memref<1x128x128xbf16, #tpu.memory_space<vmem>>, %arg5: memref<1x1x128xf32, #tpu.memory_space<vmem>>, %arg6: memref<1x128x128xbf16, #tpu.memory_space<vmem>>, %arg7: memref<1x1x128xf32, #tpu.memory_space<vmem>>, %arg8: memref<128x128xf32, #tpu.memory_space<vmem>>, %arg9: memref<1x128xf32, #tpu.memory_space<vmem>>, %arg10: memref<8x128xf32, #tpu.memory_space<vmem>>, %arg11: memref<128x128xbf16, #tpu.memory_space<vmem>>) attributes {dimension_semantics = [#tpu.dimension_semantics<arbitrary>], iteration_bounds = array<i64: 3>, scalar_prefetch = 0 : i64, scratch_operands = 1 : i64, tpu.core_type = #tpu.core_type<tc>, window_params = [{pipeline_mode = #tpu.pipeline_mode<synchronous>, transform_indices = @transform_0, window_bounds = array<i64: 128, 128>}, {pipeline_mode = #tpu.pipeline_mode<synchronous>, transform_indices = @transform_1, window_bounds = array<i64: 128, 128>}, {pipeline_mode = #tpu.pipeline_mode<synchronous>, transform_indices = @transform_2, window_bounds = array<i64: 8, 128>}, {transform_indices = @transform_3, window_bounds = array<i64: 1, 128, 128>}, {transform_indices = @transform_4, window_bounds = array<i64: 1, 1, 128>}, {transform_indices = @transform_5, window_bounds = array<i64: 1, 128, 128>}, {transform_indices = @transform_6, window_bounds = array<i64: 1, 1, 128>}, {pipeline_mode = #tpu.pipeline_mode<synchronous>, transform_indices = @transform_7, window_bounds = array<i64: 128, 128>}, {pipeline_mode = #tpu.pipeline_mode<synchronous>, transform_indices = @transform_8, window_bounds = array<i64: 1, 128>}, {pipeline_mode = #tpu.pipeline_mode<synchronous>, transform_indices = @transform_9, window_bounds = array<i64: 8, 128>}]} {
    %c0_i32 = arith.constant 0 : i32
    %0 = arith.cmpi eq, %arg0, %c0_i32 : i32
    %1 = arith.extui %0 : i1 to i32
    %c0_i32_0 = arith.constant 0 : i32
    %2 = arith.cmpi ne, %1, %c0_i32_0 : i32
    scf.if %2 {
      %c0_24 = arith.constant 0 : index
      %c0_25 = arith.constant 0 : index
      %33 = vector.load %arg2[%c0_24, %c0_25] : memref<128x128xbf16, #tpu.memory_space<vmem>>, vector<128x128xbf16>
      %c0_26 = arith.constant 0 : index
      %c0_27 = arith.constant 0 : index
      %34 = vector.load %arg11[%c0_26, %c0_27] : memref<128x128xbf16, #tpu.memory_space<vmem>>, vector<128x128xbf16>
      tpu.vector_store %arg11[%c0_26, %c0_27], %33 {strides = array<i32>} : memref<128x128xbf16, #tpu.memory_space<vmem>>, vector<128x128xbf16>,
    } else {
    }
    %c0 = arith.constant 0 : index
    %c0_1 = arith.constant 0 : index
    %3 = vector.load %arg1[%c0, %c0_1] : memref<128x128xbf16, #tpu.memory_space<vmem>>, vector<128x128xbf16>
    %c0_2 = arith.constant 0 : index
    %c0_3 = arith.constant 0 : index
    %4 = vector.load %arg11[%c0_2, %c0_3] : memref<128x128xbf16, #tpu.memory_space<vmem>>, vector<128x128xbf16>
    %cst = arith.constant dense<0.000000e+00> : vector<128x128xf32>
    %5 = tpu.matmul %3, %4, %cst {dimension_numbers = #tpu.dot_dimension_numbers<[1], [0], [0], [1], [0, 0, 1, 1], [], []>} : vector<128x128xbf16>, vector<128x128xbf16>, vector<128x128xf32> -> vector<128x128xf32>
    %6 = arith.truncf %5 : vector<128x128xf32> to vector<128x128xbf16>
    %c0_4 = arith.constant 0 : index
    %c0_5 = arith.constant 0 : index
    %c0_6 = arith.constant 0 : index
    %7 = vector.load %arg4[%c0_4, %c0_5, %c0_6] : memref<1x128x128xbf16, #tpu.memory_space<vmem>>, vector<1x128x128xbf16>
    %8 = vector.shape_cast %7 : vector<1x128x128xbf16> to vector<128x128xbf16>
    %cst_7 = arith.constant dense<0.000000e+00> : vector<128x128xf32>
    %9 = tpu.matmul %6, %8, %cst_7 {dimension_numbers = #tpu.dot_dimension_numbers<[1], [0], [0], [1], [0, 0, 1, 1], [], []>} : vector<128x128xbf16>, vector<128x128xbf16>, vector<128x128xf32> -> vector<128x128xf32>
    %c0_8 = arith.constant 0 : index
    %c0_9 = arith.constant 0 : index
    %c0_10 = arith.constant 0 : index
    %10 = vector.load %arg5[%c0_8, %c0_9, %c0_10] : memref<1x1x128xf32, #tpu.memory_space<vmem>>, vector<1x1x128xf32>
    %11 = vector.shape_cast %10 : vector<1x1x128xf32> to vector<1x128xf32>
    %12 = vector.broadcast %11 : vector<1x128xf32> to vector<128x128xf32>
    %13 = arith.addf %9, %12 : vector<128x128xf32>
    %cst_11 = arith.constant 0.000000e+00 : f32
    %14 = vector.broadcast %cst_11 : f32 to vector<128x128xf32>
    %15 = arith.maximumf %13, %14 : vector<128x128xf32>
    %16 = arith.truncf %15 : vector<128x128xf32> to vector<128x128xbf16>
    %c0_12 = arith.constant 0 : index
    %c0_13 = arith.constant 0 : index
    %c0_14 = arith.constant 0 : index
    %17 = vector.load %arg6[%c0_12, %c0_13, %c0_14] : memref<1x128x128xbf16, #tpu.memory_space<vmem>>, vector<1x128x128xbf16>
    %18 = vector.shape_cast %17 : vector<1x128x128xbf16> to vector<128x128xbf16>
    %cst_15 = arith.constant dense<0.000000e+00> : vector<128x128xf32>
    %19 = tpu.matmul %16, %18, %cst_15 {dimension_numbers = #tpu.dot_dimension_numbers<[1], [0], [0], [1], [0, 0, 1, 1], [], []>} : vector<128x128xbf16>, vector<128x128xbf16>, vector<128x128xf32> -> vector<128x128xf32>
    %c0_16 = arith.constant 0 : index
    %c0_17 = arith.constant 0 : index
    %c0_18 = arith.constant 0 : index
    %20 = vector.load %arg7[%c0_16, %c0_17, %c0_18] : memref<1x1x128xf32, #tpu.memory_space<vmem>>, vector<1x1x128xf32>
    %21 = vector.shape_cast %20 : vector<1x1x128xf32> to vector<1x128xf32>
    %22 = vector.broadcast %21 : vector<1x128xf32> to vector<128x128xf32>
    %23 = arith.addf %19, %22 : vector<128x128xf32>
    %c2_i32 = arith.constant 2 : i32
    %24 = arith.cmpi eq, %arg0, %c2_i32 : i32
    %cst_19 = arith.constant 0.000000e+00 : f32
    %25 = vector.broadcast %cst_19 : f32 to vector<128x128xf32>
    %26 = arith.maximumf %23, %25 : vector<128x128xf32>
    %27 = arith.select %24, %23, %26 : vector<128x128xf32>
    %28 = arith.truncf %27 : vector<128x128xf32> to vector<128x128xbf16>
    %c0_20 = arith.constant 0 : index
    %c0_21 = arith.constant 0 : index
    %29 = vector.load %arg11[%c0_20, %c0_21] : memref<128x128xbf16, #tpu.memory_space<vmem>>, vector<128x128xbf16>
    tpu.vector_store %arg11[%c0_20, %c0_21], %28 {strides = array<i32>} : memref<128x128xbf16, #tpu.memory_space<vmem>>, vector<128x128xbf16>,
    %c2_i32_22 = arith.constant 2 : i32
    %30 = arith.cmpi eq, %arg0, %c2_i32_22 : i32
    %31 = arith.extui %30 : i1 to i32
    %c0_i32_23 = arith.constant 0 : i32
    %32 = arith.cmpi ne, %31, %c0_i32_23 : i32
    scf.if %32 {
      %c0_24 = arith.constant 0 : index
      %c0_25 = arith.constant 0 : index
      %33 = vector.load %arg3[%c0_24, %c0_25] : memref<8x128xbf16, #tpu.memory_space<vmem>>, vector<8x128xbf16>
      %34 = arith.truncf %23 : vector<128x128xf32> to vector<128x128xbf16>
      %cst_26 = arith.constant dense<0.000000e+00> : vector<8x128xf32>
      %35 = tpu.matmul %33, %34, %cst_26 {dimension_numbers = #tpu.dot_dimension_numbers<[1], [0], [0], [1], [0, 0, 1, 1], [], []>} : vector<8x128xbf16>, vector<128x128xbf16>, vector<8x128xf32> -> vector<8x128xf32>
      %c0_27 = arith.constant 0 : index
      %c0_28 = arith.constant 0 : index
      %36 = vector.load %arg8[%c0_27, %c0_28] : memref<128x128xf32, #tpu.memory_space<vmem>>, vector<128x128xf32>
      %cst_29 = arith.constant dense<0.000000e+00> : vector<8x128xf32>
      %37 = tpu.matmul %35, %36, %cst_29 {dimension_numbers = #tpu.dot_dimension_numbers<[1], [0], [0], [1], [0, 0, 1, 1], [], []>} : vector<8x128xf32>, vector<128x128xf32>, vector<8x128xf32> -> vector<8x128xf32>
      %c0_30 = arith.constant 0 : index
      %c0_31 = arith.constant 0 : index
      %38 = vector.load %arg9[%c0_30, %c0_31] : memref<1x128xf32, #tpu.memory_space<vmem>>, vector<1x128xf32>
      %39 = vector.broadcast %38 : vector<1x128xf32> to vector<8x128xf32>
      %40 = arith.addf %37, %39 : vector<8x128xf32>
      %c0_32 = arith.constant 0 : index
      %c0_33 = arith.constant 0 : index
      %41 = vector.load %arg10[%c0_32, %c0_33] : memref<8x128xf32, #tpu.memory_space<vmem>>, vector<8x128xf32>
      tpu.vector_store %arg10[%c0_32, %c0_33], %40 {strides = array<i32>} : memref<8x128xf32, #tpu.memory_space<vmem>>, vector<8x128xf32>,
    } else {
    }
    return
  }
  func.func @transform_0(%arg0: i32) -> (i32, i32) {
    %c0_i32 = arith.constant 0 : i32
    %c0_i32_0 = arith.constant 0 : i32
    %c0_i32_1 = arith.constant 0 : i32
    return %c0_i32, %c0_i32_0 : i32, i32
  }
  func.func @transform_1(%arg0: i32) -> (i32, i32) {
    %c0_i32 = arith.constant 0 : i32
    %c0_i32_0 = arith.constant 0 : i32
    %c0_i32_1 = arith.constant 0 : i32
    return %c0_i32, %c0_i32_0 : i32, i32
  }
  func.func @transform_2(%arg0: i32) -> (i32, i32) {
    %c0_i32 = arith.constant 0 : i32
    %c0_i32_0 = arith.constant 0 : i32
    %c0_i32_1 = arith.constant 0 : i32
    return %c0_i32, %c0_i32_0 : i32, i32
  }
  func.func @transform_3(%arg0: i32) -> (i32, i32, i32) {
    %c0_i32 = arith.constant 0 : i32
    %c0_i32_0 = arith.constant 0 : i32
    %c0_i32_1 = arith.constant 0 : i32
    return %arg0, %c0_i32, %c0_i32_0 : i32, i32, i32
  }
  func.func @transform_4(%arg0: i32) -> (i32, i32, i32) {
    %c0_i32 = arith.constant 0 : i32
    %c0_i32_0 = arith.constant 0 : i32
    %c0_i32_1 = arith.constant 0 : i32
    return %arg0, %c0_i32, %c0_i32_0 : i32, i32, i32
  }
  func.func @transform_5(%arg0: i32) -> (i32, i32, i32) {
    %c0_i32 = arith.constant 0 : i32
    %c0_i32_0 = arith.constant 0 : i32
    %c0_i32_1 = arith.constant 0 : i32
    return %arg0, %c0_i32, %c0_i32_0 : i32, i32, i32
  }
  func.func @transform_6(%arg0: i32) -> (i32, i32, i32) {
    %c0_i32 = arith.constant 0 : i32
    %c0_i32_0 = arith.constant 0 : i32
    %c0_i32_1 = arith.constant 0 : i32
    return %arg0, %c0_i32, %c0_i32_0 : i32, i32, i32
  }
  func.func @transform_7(%arg0: i32) -> (i32, i32) {
    %c0_i32 = arith.constant 0 : i32
    %c0_i32_0 = arith.constant 0 : i32
    %c0_i32_1 = arith.constant 0 : i32
    return %c0_i32, %c0_i32_0 : i32, i32
  }
  func.func @transform_8(%arg0: i32) -> (i32, i32) {
    %c0_i32 = arith.constant 0 : i32
    %c0_i32_0 = arith.constant 0 : i32
    %c0_i32_1 = arith.constant 0 : i32
    return %c0_i32, %c0_i32_0 : i32, i32
  }
  func.func @transform_9(%arg0: i32) -> (i32, i32) {
    %c0_i32 = arith.constant 0 : i32
    %c0_i32_0 = arith.constant 0 : i32
    %c0_i32_1 = arith.constant 0 : i32
    return %c0_i32, %c0_i32_0 : i32, i32
  }
}

</mosaic_0001>

<llo_original>
// kernel: tpu_custom_call.1
$region0: #{tpu_custom_call.1}
  #allocation0 [shape = 'u32[]', space=smem, size = 0x4, offset = 0x4, fixed_abs, tag = 'smem constant byte address 0x4 - core index']
  #allocation1 [shape = 'u32[72,128]{1,0:T(1,128)}', space=vmem, size = 0x9000, scoped, tag = 'internal scratch']
  #allocation2 [shape = 'bf16[128,128]{1,0:T(8,128)(2,1)}', space=vmem, size = 0x8000, scoped, tag = 'scratch operand']
  %s0 = inlined_call_operand.hbm [shape: bf16[128,128], index: 0, kind: input, shape index: {}]
  %s1 = inlined_call_operand.hbm [shape: bf16[128,128], index: 1, kind: input, shape index: {}]
  %s2 = inlined_call_operand.hbm [shape: bf16[8,128], index: 2, kind: input, shape index: {}]
  %s3 = inlined_call_operand.hbm [shape: bf16[3,128,128], index: 3, kind: input, shape index: {}]
  %s4 = inlined_call_operand.vmem [shape: f32[3,1,128], index: 4, kind: input, shape index: {}]
  %s5 = inlined_call_operand.hbm [shape: bf16[3,128,128], index: 5, kind: input, shape index: {}]
  %s6 = inlined_call_operand.hbm [shape: f32[3,1,128], index: 6, kind: input, shape index: {}]
  %s7 = inlined_call_operand.hbm [shape: f32[128,128], index: 7, kind: input, shape index: {}]
  %s8 = inlined_call_operand.vmem [shape: f32[1,128], index: 8, kind: input, shape index: {}]
  %s9 = inlined_call_operand.hbm [shape: f32[8,128], index: 9, kind: output, shape index: {}]
  %s10 = sld [smem:[#allocation0]]
  $region105: #{tpu_custom_call.1} parent=0
    _
  %s12 = ssub.s32 1, %s10
  %s13 = scalar_select 0, %s12, %s10
  $region1: #{tpu_custom_call.1} parent=0
    #allocation3 [shape = 'u8[32768]{0}', space=vmem, size = 0x8000, scoped, tag = 'input window, operand 0, single buffered']
    #allocation4 [shape = 's32[2]{0}', space=sflag, size = 0x8, scoped, tag = 'scoped memory for tpu_custom_call.1']
    #allocation5 [shape = 's32[2]{0}', space=sflag, size = 0x8, scoped, tag = 'scoped memory for tpu_custom_call.1']
    #allocation6 [shape = 'u8[32768]{0}', space=vmem, size = 0x8000, scoped, tag = 'input window, operand 1, single buffered']
    #allocation7 [shape = 's32[1]{0}', space=sflag, size = 0x4, scoped, tag = 'scoped memory for tpu_custom_call.1']
    #allocation8 [shape = 'u8[2048]{0}', space=vmem, size = 0x800, scoped, tag = 'input window, operand 2, single buffered']
    #allocation9 [shape = 'u8[65536]{0}', space=vmem, size = 0x10000, scoped, tag = 'input window, operand 3']
    #allocation10 [shape = 's32[2]{0}', space=sflag, size = 0x8, scoped, tag = 'scoped memory for tpu_custom_call.1']
    #allocation11 [shape = 'u8[65536]{0}', space=vmem, size = 0x10000, scoped, tag = 'input window, operand 5']
    #allocation12 [shape = 'u8[1024]{0}', space=vmem, size = 0x400, scoped, tag = 'input window, operand 6']
    #allocation13 [shape = 's32[2]{0}', space=sflag, size = 0x8, scoped, tag = 'scoped memory for tpu_custom_call.1']
    #allocation14 [shape = 'u8[65536]{0}', space=vmem, size = 0x10000, scoped, tag = 'input window, operand 7, single buffered']
    #allocation15 [shape = 'u8[4096]{0}', space=vmem, size = 0x1000, scoped, tag = 'output window, operand 0, single buffered']
    %14 = vsyncpa [#allocation4], 0
    %15 = vsyncpa [#allocation7], 0
    %16 = vsyncpa [#allocation10], 0
    %s17 = scalar_lea.sflag [#allocation10], 1
    %18 = vsyncpa %s17, 0
    %19 = vsyncpa [#allocation13], 0
    %s20 = scalar_lea.sflag [#allocation13], 1
    %21 = vsyncpa %s20, 0
    %22 = vsyncpa [#allocation5], 0
    loop: start=0, step=1, limit=5
    $region2: #{tpu_custom_call.1} parent=1 // loop_pre_header
      _
    $region3: #{tpu_custom_call.1} parent=1 // loop_header
      %s24 = sphi 0, %s28
      %p25 = scmp.ge.s32.totalorder %s24, 5
      %s32 = sphi 0, %s32
      %s34 = sphi 0, %s32
      %s35 = sphi 0, %s34
      %s49 = sphi 0, %s35
      %s53 = sphi 0, %s53
      %s55 = sphi 0, %s53
      %s56 = sphi 0, %s55
      %s70 = sphi 0, %s56
      %s74 = sphi 0, %s74
      %s76 = sphi 0, %s74
      %s77 = sphi 0, %s76
      %s91 = sphi 0, %s77
      %s97 = sphi 0, %s99
      %s100 = sphi 0, %s97
      %s101 = sphi 0, %s100
      %s117 = sphi 0, %s101
      %s123 = sphi 0, %s125
      %s126 = sphi 0, %s123
      %s127 = sphi 0, %s126
      %s143 = sphi 0, %s127
      %s149 = sphi 0, %s151
      %s152 = sphi 0, %s149
      %s153 = sphi 0, %s152
      %s169 = sphi 0, %s153
      %s175 = sphi 0, %s177
      %s178 = sphi 0, %s175
      %s179 = sphi 0, %s178
      %s195 = sphi 0, %s179
      %s199 = sphi 0, %s199
      %s201 = sphi 0, %s199
      %s202 = sphi 0, %s201
      %s216 = sphi 0, %s202
      %s220 = sphi 0, %s220
      %s222 = sphi 0, %s220
      %s223 = sphi 0, %s222
      %s237 = sphi 0, %s223
      %s241 = sphi 0, %s241
      %s243 = sphi 0, %s241
      %s244 = sphi 0, %s243
      %s258 = sphi 0, %s244
    $region4: #{tpu_custom_call.1} parent=1 // loop_header_branch
      %27 = sbr.rel (%p25) target = $region8
    $region5: #{tpu_custom_call.1} parent=1 // loop_body
      %s29 = ssub.s32 %s24, 1
      %s30 = ssub.s32 %s24, 2
      %s31 = sadd.s32 %s24, 1
      %s33 = sadd.s32 %s32, 1
      %p36 = scmp.eq.s32.totalorder %s24, 2
      %p37 = scmp.ne.s32.totalorder %s32, %s34
      %p38 = scmp.eq.s32.totalorder %s24, 0
      %p39 = por %p37, %p38
      %p40 = scmp.ne.s32.totalorder %s32, %s34
      %p41 = scmp.eq.s32.totalorder %s29, 2
      %p42 = por %p40, %p41
      %p43 = scmp.ne.s32.totalorder %s34, %s35
      %p44 = scmp.eq.s32.totalorder %s29, 0
      %p45 = por %p43, %p44
      %p46 = scmp.ne.s32.totalorder %s34, %s35
      %p47 = scmp.eq.s32.totalorder %s30, 2
      %p48 = por %p46, %p47
      %p50 = scmp.ne.s32.totalorder %s35, %s49
      %p51 = scmp.eq.s32.totalorder %s30, 0
      %p52 = por %p50, %p51
      %s54 = sadd.s32 %s53, 1
      %p57 = scmp.eq.s32.totalorder %s24, 2
      %p58 = scmp.ne.s32.totalorder %s53, %s55
      %p59 = scmp.eq.s32.totalorder %s24, 0
      %p60 = por %p58, %p59
      %p61 = scmp.ne.s32.totalorder %s53, %s55
      %p62 = scmp.eq.s32.totalorder %s29, 2
      %p63 = por %p61, %p62
      %p64 = scmp.ne.s32.totalorder %s55, %s56
      %p65 = scmp.eq.s32.totalorder %s29, 0
      %p66 = por %p64, %p65
      %p67 = scmp.ne.s32.totalorder %s55, %s56
      %p68 = scmp.eq.s32.totalorder %s30, 2
      %p69 = por %p67, %p68
      %p71 = scmp.ne.s32.totalorder %s56, %s70
      %p72 = scmp.eq.s32.totalorder %s30, 0
      %p73 = por %p71, %p72
      %s75 = sadd.s32 %s74, 1
      %p78 = scmp.eq.s32.totalorder %s24, 2
      %p79 = scmp.ne.s32.totalorder %s74, %s76
      %p80 = scmp.eq.s32.totalorder %s24, 0
      %p81 = por %p79, %p80
      %p82 = scmp.ne.s32.totalorder %s74, %s76
      %p83 = scmp.eq.s32.totalorder %s29, 2
      %p84 = por %p82, %p83
      %p85 = scmp.ne.s32.totalorder %s76, %s77
      %p86 = scmp.eq.s32.totalorder %s29, 0
      %p87 = por %p85, %p86
      %p88 = scmp.ne.s32.totalorder %s76, %s77
      %p89 = scmp.eq.s32.totalorder %s30, 2
      %p90 = por %p88, %p89
      %p92 = scmp.ne.s32.totalorder %s77, %s91
      %p93 = scmp.eq.s32.totalorder %s30, 0
      %p94 = por %p92, %p93
      %s95 = ssub.s32 %s24, %s31
      %p96 = scmp.eq.s32.totalorder %s95, 0
      %s98 = sadd.s32 %s97, 1
      %s99 = scalar_select %p96, %s97, %s98
      %p102 = pneg %p96
      %p103 = scmp.eq.s32.totalorder %s24, 2
      %p104 = por %p102, %p103
      %p105 = scmp.ne.s32.totalorder %s97, %s100
      %p106 = scmp.eq.s32.totalorder %s24, 0
      %p107 = por %p105, %p106
      %p108 = scmp.ne.s32.totalorder %s97, %s100
      %p109 = scmp.eq.s32.totalorder %s29, 2
      %p110 = por %p108, %p109
      %p111 = scmp.ne.s32.totalorder %s100, %s101
      %p112 = scmp.eq.s32.totalorder %s29, 0
      %p113 = por %p111, %p112
      %p114 = scmp.ne.s32.totalorder %s100, %s101
      %p115 = scmp.eq.s32.totalorder %s30, 2
      %p116 = por %p114, %p115
      %p118 = scmp.ne.s32.totalorder %s101, %s117
      %p119 = scmp.eq.s32.totalorder %s30, 0
      %p120 = por %p118, %p119
      %s121 = ssub.s32 %s24, %s31
      %p122 = scmp.eq.s32.totalorder %s121, 0
      %s124 = sadd.s32 %s123, 1
      %s125 = scalar_select %p122, %s123, %s124
      %p128 = pneg %p122
      %p129 = scmp.eq.s32.totalorder %s24, 2
      %p130 = por %p128, %p129
      %p131 = scmp.ne.s32.totalorder %s123, %s126
      %p132 = scmp.eq.s32.totalorder %s24, 0
      %p133 = por %p131, %p132
      %p134 = scmp.ne.s32.totalorder %s123, %s126
      %p135 = scmp.eq.s32.totalorder %s29, 2
      %p136 = por %p134, %p135
      %p137 = scmp.ne.s32.totalorder %s126, %s127
      %p138 = scmp.eq.s32.totalorder %s29, 0
      %p139 = por %p137, %p138
      %p140 = scmp.ne.s32.totalorder %s126, %s127
      %p141 = scmp.eq.s32.totalorder %s30, 2
      %p142 = por %p140, %p141
      %p144 = scmp.ne.s32.totalorder %s127, %s143
      %p145 = scmp.eq.s32.totalorder %s30, 0
      %p146 = por %p144, %p145
      %s147 = ssub.s32 %s24, %s31
      %p148 = scmp.eq.s32.totalorder %s147, 0
      %s150 = sadd.s32 %s149, 1
      %s151 = scalar_select %p148, %s149, %s150
      %p154 = pneg %p148
      %p155 = scmp.eq.s32.totalorder %s24, 2
      %p156 = por %p154, %p155
      %p157 = scmp.ne.s32.totalorder %s149, %s152
      %p158 = scmp.eq.s32.totalorder %s24, 0
      %p159 = por %p157, %p158
      %p160 = scmp.ne.s32.totalorder %s149, %s152
      %p161 = scmp.eq.s32.totalorder %s29, 2
      %p162 = por %p160, %p161
      %p163 = scmp.ne.s32.totalorder %s152, %s153
      %p164 = scmp.eq.s32.totalorder %s29, 0
      %p165 = por %p163, %p164
      %p166 = scmp.ne.s32.totalorder %s152, %s153
      %p167 = scmp.eq.s32.totalorder %s30, 2
      %p168 = por %p166, %p167
      %p170 = scmp.ne.s32.totalorder %s153, %s169
      %p171 = scmp.eq.s32.totalorder %s30, 0
      %p172 = por %p170, %p171
      %s173 = ssub.s32 %s24, %s31
      %p174 = scmp.eq.s32.totalorder %s173, 0
      %s176 = sadd.s32 %s175, 1
      %s177 = scalar_select %p174, %s175, %s176
      %p180 = pneg %p174
      %p181 = scmp.eq.s32.totalorder %s24, 2
      %p182 = por %p180, %p181
      %p183 = scmp.ne.s32.totalorder %s175, %s178
      %p184 = scmp.eq.s32.totalorder %s24, 0
      %p185 = por %p183, %p184
      %p186 = scmp.ne.s32.totalorder %s175, %s178
      %p187 = scmp.eq.s32.totalorder %s29, 2
      %p188 = por %p186, %p187
      %p189 = scmp.ne.s32.totalorder %s178, %s179
      %p190 = scmp.eq.s32.totalorder %s29, 0
      %p191 = por %p189, %p190
      %p192 = scmp.ne.s32.totalorder %s178, %s179
      %p193 = scmp.eq.s32.totalorder %s30, 2
      %p194 = por %p192, %p193
      %p196 = scmp.ne.s32.totalorder %s179, %s195
      %p197 = scmp.eq.s32.totalorder %s30, 0
      %p198 = por %p196, %p197
      %s200 = sadd.s32 %s199, 1
      %p203 = scmp.eq.s32.totalorder %s24, 2
      %p204 = scmp.ne.s32.totalorder %s199, %s201
      %p205 = scmp.eq.s32.totalorder %s24, 0
      %p206 = por %p204, %p205
      %p207 = scmp.ne.s32.totalorder %s199, %s201
      %p208 = scmp.eq.s32.totalorder %s29, 2
      %p209 = por %p207, %p208
      %p210 = scmp.ne.s32.totalorder %s201, %s202
      %p211 = scmp.eq.s32.totalorder %s29, 0
      %p212 = por %p210, %p211
      %p213 = scmp.ne.s32.totalorder %s201, %s202
      %p214 = scmp.eq.s32.totalorder %s30, 2
      %p215 = por %p213, %p214
      %p217 = scmp.ne.s32.totalorder %s202, %s216
      %p218 = scmp.eq.s32.totalorder %s30, 0
      %p219 = por %p217, %p218
      %s221 = sadd.s32 %s220, 1
      %p224 = scmp.eq.s32.totalorder %s24, 2
      %p225 = scmp.ne.s32.totalorder %s220, %s222
      %p226 = scmp.eq.s32.totalorder %s24, 0
      %p227 = por %p225, %p226
      %p228 = scmp.ne.s32.totalorder %s220, %s222
      %p229 = scmp.eq.s32.totalorder %s29, 2
      %p230 = por %p228, %p229
      %p231 = scmp.ne.s32.totalorder %s222, %s223
      %p232 = scmp.eq.s32.totalorder %s29, 0
      %p233 = por %p231, %p232
      %p234 = scmp.ne.s32.totalorder %s222, %s223
      %p235 = scmp.eq.s32.totalorder %s30, 2
      %p236 = por %p234, %p235
      %p238 = scmp.ne.s32.totalorder %s223, %s237
      %p239 = scmp.eq.s32.totalorder %s30, 0
      %p240 = por %p238, %p239
      %s242 = sadd.s32 %s241, 1
      %p245 = scmp.eq.s32.totalorder %s24, 2
      %p246 = scmp.ne.s32.totalorder %s241, %s243
      %p247 = scmp.eq.s32.totalorder %s24, 0
      %p248 = por %p246, %p247
      %p249 = scmp.ne.s32.totalorder %s241, %s243
      %p250 = scmp.eq.s32.totalorder %s29, 2
      %p251 = por %p249, %p250
      %p252 = scmp.ne.s32.totalorder %s243, %s244
      %p253 = scmp.eq.s32.totalorder %s29, 0
      %p254 = por %p252, %p253
      %p255 = scmp.ne.s32.totalorder %s243, %s244
      %p256 = scmp.eq.s32.totalorder %s30, 2
      %p257 = por %p255, %p256
      %p259 = scmp.ne.s32.totalorder %s244, %s258
      %p260 = scmp.eq.s32.totalorder %s30, 0
      %p261 = por %p259, %p260
      %p262 = scmp.le.s32.totalorder 1, %s24
      %p263 = scmp.lt.s32.totalorder %s24, 4
      %p264 = pnand %p262, %p263
      %p265 = pneg %p264
      // Predicated region
      $region9: #{tpu_custom_call.1} parent=5 // pred_check
        _
      $region10: #{tpu_custom_call.1} parent=5 // pred_check_branch
        %267 = sbr.rel (%p264) target = $region12
      $region11: #{tpu_custom_call.1} parent=5 // pred_region
        %s268 = ssub.s32 %s24, 1
        // Predicated region
        $region13: #{tpu_custom_call.1} parent=11 // pred_check
          %p269 = pneg %p45
        $region14: #{tpu_custom_call.1} parent=11 // pred_check_branch
          %271 = sbr.rel (%p269) target = $region16
        $region15: #{tpu_custom_call.1} parent=11 // pred_region
          %273 = vsyncadd [#allocation4], 0
          %s274 = sshll.u32 %s0, 4
          %s275 = int_to_ptr.hbm [resolvable:$true] %s274
          %s276 = sshll.u32 [#allocation3], 4
          %s277 = int_to_ptr.vmem [resolvable:$true] %s276
          %282 = dma.hbm_to_vmem [thread:$0]  %s275, 1024, %s277, [#allocation4], 64, 64, 4
        $region16: #{tpu_custom_call.1} parent=11 // pred_fallthru
          _
        // Predicated region
        $region17: #{tpu_custom_call.1} parent=11 // pred_check
          %p283 = pneg %p66
        $region18: #{tpu_custom_call.1} parent=11 // pred_check_branch
          %285 = sbr.rel (%p283) target = $region20
        $region19: #{tpu_custom_call.1} parent=11 // pred_region
          %287 = vsyncadd [#allocation7], 0
          %s288 = sshll.u32 %s1, 4
          %s289 = int_to_ptr.hbm [resolvable:$true] %s288
          %s290 = sshll.u32 [#allocation6], 4
          %s291 = int_to_ptr.vmem [resolvable:$true] %s290
          %296 = dma.hbm_to_vmem [thread:$0]  %s289, 1024, %s291, [#allocation7], 64, 64, 4
        $region20: #{tpu_custom_call.1} parent=11 // pred_fallthru
          _
        // Predicated region
        $region21: #{tpu_custom_call.1} parent=11 // pred_check
          %p297 = pneg %p87
        $region22: #{tpu_custom_call.1} parent=11 // pred_check_branch
          %299 = sbr.rel (%p297) target = $region24
        $region23: #{tpu_custom_call.1} parent=11 // pred_region
          %301 = vsyncadd [#allocation7], 0
          %s303 = sshll.u32 %s2, 4
          %s304 = int_to_ptr.hbm [resolvable:$true] %s303
          %s305 = sshll.u32 [#allocation8], 4
          %s306 = int_to_ptr.vmem [resolvable:$true] %s305
          %308 = dma.hbm_to_vmem [thread:$0]  %s304, 64, %s306, [#allocation7]
        $region24: #{tpu_custom_call.1} parent=11 // pred_fallthru
          _
        // Predicated region
        $region25: #{tpu_custom_call.1} parent=11 // pred_check
          %p309 = pneg %p212
        $region26: #{tpu_custom_call.1} parent=11 // pred_check_branch
          %311 = sbr.rel (%p309) target = $region28
        $region27: #{tpu_custom_call.1} parent=11 // pred_region
          %313 = vsyncadd [#allocation13], 0
          %s314 = sshll.u32 %s7, 4
          %s315 = int_to_ptr.hbm [resolvable:$true] %s314
          %s316 = sshll.u32 [#allocation14], 4
          %s317 = int_to_ptr.vmem [resolvable:$true] %s316
          %322 = dma.hbm_to_vmem [thread:$0]  %s315, 2048, %s317, [#allocation13], 128, 128, 8
        $region28: #{tpu_custom_call.1} parent=11 // pred_fallthru
          _
        // Predicated region
        $region29: #{tpu_custom_call.1} parent=11 // pred_check
          %p323 = pneg %p233
        $region30: #{tpu_custom_call.1} parent=11 // pred_check_branch
          %325 = sbr.rel (%p323) target = $region32
        $region31: #{tpu_custom_call.1} parent=11 // pred_region
          _
        $region32: #{tpu_custom_call.1} parent=11 // pred_fallthru
          _
      $region12: #{tpu_custom_call.1} parent=5 // pred_fallthru
        _
      %p326 = scmp.lt.s32.totalorder %s24, 3
      // Predicated region
      $region33: #{tpu_custom_call.1} parent=5 // pred_check
        %p327 = pneg %p326
      $region34: #{tpu_custom_call.1} parent=5 // pred_check_branch
        %329 = sbr.rel (%p327) target = $region36
      $region35: #{tpu_custom_call.1} parent=5 // pred_region
        // Predicated region
        $region37: #{tpu_custom_call.1} parent=35 // pred_check
          %p330 = pneg %p107
        $region38: #{tpu_custom_call.1} parent=35 // pred_check_branch
          %332 = sbr.rel (%p330) target = $region40
        $region39: #{tpu_custom_call.1} parent=35 // pred_region
          %s333 = sand.u32 %s24, 1
          %s334 = scalar_lea.sflag [#allocation10], %s333
          %s335 = sand.u32 %s97, 1
          %s336 = smul.addr %s335, 64
          %s337 = scalar_lea.vmem [#allocation9], %s336
          %339 = vsyncadd %s334, 0
          %s340 = smul.addr %s24, 16
          %s341 = smul.addr %s340, 4
          %s342 = scalar_lea.hbm %s3, %s341
          %s343 = sshll.u32 %s342, 4
          %s344 = int_to_ptr.hbm [resolvable:$true] %s343
          %s345 = sshll.u32 %s337, 4
          %s346 = int_to_ptr.vmem [resolvable:$true] %s345
          %351 = dma.hbm_to_vmem [thread:$0]  %s344, 1024, %s346, %s334, 64, 64, 4
        $region40: #{tpu_custom_call.1} parent=35 // pred_fallthru
          _
        // Predicated region
        $region41: #{tpu_custom_call.1} parent=35 // pred_check
          %p352 = pneg %p133
        $region42: #{tpu_custom_call.1} parent=35 // pred_check_branch
          %354 = sbr.rel (%p352) target = $region44
        $region43: #{tpu_custom_call.1} parent=35 // pred_region
          %p355 = scmp.lt.s32.totalorder %s24, 2
          %s356 = scalar_select %p355, %s24, 2
          %s357 = scalar_lea.vmem %s4, %s356
        $region44: #{tpu_custom_call.1} parent=35 // pred_fallthru
          _
        // Predicated region
        $region45: #{tpu_custom_call.1} parent=35 // pred_check
          %p358 = pneg %p159
        $region46: #{tpu_custom_call.1} parent=35 // pred_check_branch
          %360 = sbr.rel (%p358) target = $region48
        $region47: #{tpu_custom_call.1} parent=35 // pred_region
          %s361 = sand.u32 %s24, 1
          %s362 = scalar_lea.sflag [#allocation10], %s361
          %s363 = sand.u32 %s149, 1
          %s364 = smul.addr %s363, 64
          %s365 = scalar_lea.vmem [#allocation11], %s364
          %367 = vsyncadd %s362, 0
          %s368 = smul.addr %s24, 16
          %s369 = smul.addr %s368, 4
          %s370 = scalar_lea.hbm %s5, %s369
          %s371 = sshll.u32 %s370, 4
          %s372 = int_to_ptr.hbm [resolvable:$true] %s371
          %s373 = sshll.u32 %s365, 4
          %s374 = int_to_ptr.vmem [resolvable:$true] %s373
          %379 = dma.hbm_to_vmem [thread:$0]  %s372, 1024, %s374, %s362, 64, 64, 4
        $region48: #{tpu_custom_call.1} parent=35 // pred_fallthru
          _
        // Predicated region
        $region49: #{tpu_custom_call.1} parent=35 // pred_check
          %p380 = pneg %p185
        $region50: #{tpu_custom_call.1} parent=35 // pred_check_branch
          %382 = sbr.rel (%p380) target = $region52
        $region51: #{tpu_custom_call.1} parent=35 // pred_region
          %s383 = sand.u32 %s24, 1
          %s384 = scalar_lea.sflag [#allocation13], %s383
          %s385 = sand.u32 %s175, 1
          %s386 = scalar_lea.vmem [#allocation12], %s385
          %388 = vsyncadd %s384, 0
          %s389 = scalar_lea.hbm %s6, %s24
          %s391 = sshll.u32 %s389, 4
          %s392 = int_to_ptr.hbm [resolvable:$true] %s391
          %s393 = sshll.u32 %s386, 4
          %s394 = int_to_ptr.vmem [resolvable:$true] %s393
          %396 = dma.hbm_to_vmem [thread:$0]  %s392, 16, %s394, %s384
        $region52: #{tpu_custom_call.1} parent=35 // pred_fallthru
          _
      $region36: #{tpu_custom_call.1} parent=5 // pred_fallthru
        _
      %p397 = scmp.le.s32.totalorder 1, %s24
      %p398 = scmp.lt.s32.totalorder %s24, 4
      %p399 = pnand %p397, %p398
      %p400 = pneg %p399
      // Predicated region
      $region53: #{tpu_custom_call.1} parent=5 // pred_check
        _
      $region54: #{tpu_custom_call.1} parent=5 // pred_check_branch
        %402 = sbr.rel (%p399) target = $region56
      $region55: #{tpu_custom_call.1} parent=5 // pred_region
        %s403 = ssub.s32 %s24, 1
        // Predicated region
        $region57: #{tpu_custom_call.1} parent=55 // pred_check
          %p404 = pneg %p45
        $region58: #{tpu_custom_call.1} parent=55 // pred_check_branch
          %406 = sbr.rel (%p404) target = $region60
        $region59: #{tpu_custom_call.1} parent=55 // pred_region
          %408 = dma.done [#allocation4], 1024
        $region60: #{tpu_custom_call.1} parent=55 // pred_fallthru
          _
        // Predicated region
        $region61: #{tpu_custom_call.1} parent=55 // pred_check
          %p409 = pneg %p66
        $region62: #{tpu_custom_call.1} parent=55 // pred_check_branch
          %411 = sbr.rel (%p409) target = $region64
        $region63: #{tpu_custom_call.1} parent=55 // pred_region
          %413 = dma.done [#allocation7], 1024
        $region64: #{tpu_custom_call.1} parent=55 // pred_fallthru
          _
        // Predicated region
        $region65: #{tpu_custom_call.1} parent=55 // pred_check
          %p414 = pneg %p87
        $region66: #{tpu_custom_call.1} parent=55 // pred_check_branch
          %416 = sbr.rel (%p414) target = $region68
        $region67: #{tpu_custom_call.1} parent=55 // pred_region
          %418 = dma.done [#allocation7], 64
        $region68: #{tpu_custom_call.1} parent=55 // pred_fallthru
          _
        %s419 = sand.u32 %s29, 1
        %s420 = scalar_lea.sflag [#allocation10], %s419
        %s421 = sand.u32 %s100, 1
        %s422 = smul.addr %s421, 64
        %s423 = scalar_lea.vmem [#allocation9], %s422
        // Predicated region
        $region69: #{tpu_custom_call.1} parent=55 // pred_check
          %p424 = pneg %p113
        $region70: #{tpu_custom_call.1} parent=55 // pred_check_branch
          %426 = sbr.rel (%p424) target = $region72
        $region71: #{tpu_custom_call.1} parent=55 // pred_region
          %428 = dma.done %s420, 1024
        $region72: #{tpu_custom_call.1} parent=55 // pred_fallthru
          _
        %s429 = sand.u32 %s29, 1
        %s430 = scalar_lea.sflag [#allocation10], %s429
        %s431 = sand.u32 %s152, 1
        %s432 = smul.addr %s431, 64
        %s433 = scalar_lea.vmem [#allocation11], %s432
        // Predicated region
        $region73: #{tpu_custom_call.1} parent=55 // pred_check
          %p434 = pneg %p165
        $region74: #{tpu_custom_call.1} parent=55 // pred_check_branch
          %436 = sbr.rel (%p434) target = $region76
        $region75: #{tpu_custom_call.1} parent=55 // pred_region
          %438 = dma.done %s430, 1024
        $region76: #{tpu_custom_call.1} parent=55 // pred_fallthru
          _
        %s439 = sand.u32 %s29, 1
        %s440 = scalar_lea.sflag [#allocation13], %s439
        %s441 = sand.u32 %s178, 1
        %s442 = scalar_lea.vmem [#allocation12], %s441
        // Predicated region
        $region77: #{tpu_custom_call.1} parent=55 // pred_check
          %p443 = pneg %p191
        $region78: #{tpu_custom_call.1} parent=55 // pred_check_branch
          %445 = sbr.rel (%p443) target = $region80
        $region79: #{tpu_custom_call.1} parent=55 // pred_region
          %447 = dma.done %s440, 16
        $region80: #{tpu_custom_call.1} parent=55 // pred_fallthru
          _
        // Predicated region
        $region81: #{tpu_custom_call.1} parent=55 // pred_check
          %p448 = pneg %p212
        $region82: #{tpu_custom_call.1} parent=55 // pred_check_branch
          %450 = sbr.rel (%p448) target = $region84
        $region83: #{tpu_custom_call.1} parent=55 // pred_region
          %452 = dma.done [#allocation13], 2048
        $region84: #{tpu_custom_call.1} parent=55 // pred_fallthru
          _
        %p453 = pneg %p45
        %p454 = pneg %p42
        %p455 = pneg %p66
        %p456 = pneg %p63
        %p457 = pneg %p87
        %p458 = pneg %p84
        %s459 = sand.u32 %s29, 1
        %s460 = scalar_lea.sflag [#allocation10], %s459
        %s461 = sand.u32 %s100, 1
        %s462 = smul.addr %s461, 64
        %s463 = scalar_lea.vmem [#allocation9], %s462
        %p464 = pneg %p113
        %p465 = pneg %p110
        %p466 = scmp.lt.s32.totalorder %s29, 2
        %s467 = scalar_select %p466, %s29, 2
        %s468 = scalar_lea.vmem %s4, %s467
        %p469 = pneg %p139
        %p470 = pneg %p136
        %s471 = sand.u32 %s29, 1
        %s472 = scalar_lea.sflag [#allocation10], %s471
        %s473 = sand.u32 %s152, 1
        %s474 = smul.addr %s473, 64
        %s475 = scalar_lea.vmem [#allocation11], %s474
        %p476 = pneg %p165
        %p477 = pneg %p162
        %s478 = sand.u32 %s29, 1
        %s479 = scalar_lea.sflag [#allocation13], %s478
        %s480 = sand.u32 %s178, 1
        %s481 = scalar_lea.vmem [#allocation12], %s480
        %p482 = pneg %p191
        %p483 = pneg %p188
        %p484 = pneg %p212
        %p485 = pneg %p209
        %p486 = pneg %p233
        %p487 = pneg %p230
        %p488 = pneg %p254
        %p489 = pneg %p251
        %p490 = scmp.lt.s32.totalorder %s29, 2
        %s491 = scalar_select %p490, %s29, 2
        %s492 = scalar_lea.vmem %s4, %s491
        %p493 = scmp.eq.s32.totalorder %s29, 0
        // Predicated region
        $region85: #{tpu_custom_call.1} parent=55 // pred_check
          %p494 = pneg %p493
        $region86: #{tpu_custom_call.1} parent=55 // pred_check_branch
          %496 = sbr.rel (%p494) target = $region88
        $region87: #{tpu_custom_call.1} parent=55 // pred_region
          %v497 = vld [vmem:[#allocation6] sm:$0xf]
          %v498 = vld [vmem:[#allocation6 + $0x4] sm:$0xf]
          %v499 = vld [vmem:[#allocation6 + $0x8] sm:$0xf]
          %v500 = vld [vmem:[#allocation6 + $0xc] sm:$0xf]
          %v501 = vld [vmem:[#allocation6 + $0x10] sm:$0xf]
          %v502 = vld [vmem:[#allocation6 + $0x14] sm:$0xf]
          %v503 = vld [vmem:[#allocation6 + $0x18] sm:$0xf]
          %v504 = vld [vmem:[#allocation6 + $0x1c] sm:$0xf]
          %v505 = vld [vmem:[#allocation6 + $0x20] sm:$0xf]
          %v506 = vld [vmem:[#allocation6 + $0x24] sm:$0xf]
          %v507 = vld [vmem:[#allocation6 + $0x28] sm:$0xf]
          %v508 = vld [vmem:[#allocation6 + $0x2c] sm:$0xf]
          %v509 = vld [vmem:[#allocation6 + $0x30] sm:$0xf]
          %v510 = vld [vmem:[#allocation6 + $0x34] sm:$0xf]
          %v511 = vld [vmem:[#allocation6 + $0x38] sm:$0xf]
          %v512 = vld [vmem:[#allocation6 + $0x3c] sm:$0xf]
          %513 = vst [vmem:[#allocation2] sm:$0xf] %v497
          %514 = vst [vmem:[#allocation2 + $0x4] sm:$0xf] %v498
          %515 = vst [vmem:[#allocation2 + $0x8] sm:$0xf] %v499
          %516 = vst [vmem:[#allocation2 + $0xc] sm:$0xf] %v500
          %517 = vst [vmem:[#allocation2 + $0x10] sm:$0xf] %v501
          %518 = vst [vmem:[#allocation2 + $0x14] sm:$0xf] %v502
          %519 = vst [vmem:[#allocation2 + $0x18] sm:$0xf] %v503
          %520 = vst [vmem:[#allocation2 + $0x1c] sm:$0xf] %v504
          %521 = vst [vmem:[#allocation2 + $0x20] sm:$0xf] %v505
          %522 = vst [vmem:[#allocation2 + $0x24] sm:$0xf] %v506
          %523 = vst [vmem:[#allocation2 + $0x28] sm:$0xf] %v507
          %524 = vst [vmem:[#allocation2 + $0x2c] sm:$0xf] %v508
          %525 = vst [vmem:[#allocation2 + $0x30] sm:$0xf] %v509
          %526 = vst [vmem:[#allocation2 + $0x34] sm:$0xf] %v510
          %527 = vst [vmem:[#allocation2 + $0x38] sm:$0xf] %v511
          %528 = vst [vmem:[#allocation2 + $0x3c] sm:$0xf] %v512
        $region88: #{tpu_custom_call.1} parent=55 // pred_fallthru
          _
        %v529 = vld [vmem:[#allocation3] sm:$0xf]
        %v530 = vld [vmem:[#allocation3 + $0x4] sm:$0xf]
        %v531 = vld [vmem:[#allocation3 + $0x8] sm:$0xf]
        %v532 = vld [vmem:[#allocation3 + $0xc] sm:$0xf]
        %v533 = vld [vmem:[#allocation3 + $0x10] sm:$0xf]
        %v534 = vld [vmem:[#allocation3 + $0x14] sm:$0xf]
        %v535 = vld [vmem:[#allocation3 + $0x18] sm:$0xf]
        %v536 = vld [vmem:[#allocation3 + $0x1c] sm:$0xf]
        %v537 = vld [vmem:[#allocation3 + $0x20] sm:$0xf]
        %v538 = vld [vmem:[#allocation3 + $0x24] sm:$0xf]
        %v539 = vld [vmem:[#allocation3 + $0x28] sm:$0xf]
        %v540 = vld [vmem:[#allocation3 + $0x2c] sm:$0xf]
        %v541 = vld [vmem:[#allocation3 + $0x30] sm:$0xf]
        %v542 = vld [vmem:[#allocation3 + $0x34] sm:$0xf]
        %v543 = vld [vmem:[#allocation3 + $0x38] sm:$0xf]
        %v544 = vld [vmem:[#allocation3 + $0x3c] sm:$0xf]
        %v545 = vld [vmem:[#allocation2] sm:$0xf]
        %v546 = vld [vmem:[#allocation2 + $0x4] sm:$0xf]
        %v547 = vld [vmem:[#allocation2 + $0x8] sm:$0xf]
        %v548 = vld [vmem:[#allocation2 + $0xc] sm:$0xf]
        %v549 = vld [vmem:[#allocation2 + $0x10] sm:$0xf]
        %v550 = vld [vmem:[#allocation2 + $0x14] sm:$0xf]
        %v551 = vld [vmem:[#allocation2 + $0x18] sm:$0xf]
        %v552 = vld [vmem:[#allocation2 + $0x1c] sm:$0xf]
        %v553 = vld [vmem:[#allocation2 + $0x20] sm:$0xf]
        %v554 = vld [vmem:[#allocation2 + $0x24] sm:$0xf]
        %v555 = vld [vmem:[#allocation2 + $0x28] sm:$0xf]
        %v556 = vld [vmem:[#allocation2 + $0x2c] sm:$0xf]
        %v557 = vld [vmem:[#allocation2 + $0x30] sm:$0xf]
        %v558 = vld [vmem:[#allocation2 + $0x34] sm:$0xf]
        %v559 = vld [vmem:[#allocation2 + $0x38] sm:$0xf]
        %v560 = vld [vmem:[#allocation2 + $0x3c] sm:$0xf]
        %v577 = vunpack.c.l.b16 %v529
        %v578 = vunpack.c.l.b16 %v530
        %v579 = vunpack.c.l.b16 %v531
        %v580 = vunpack.c.l.b16 %v532
        %v581 = vunpack.c.l.b16 %v533
        %v582 = vunpack.c.l.b16 %v534
        %v583 = vunpack.c.l.b16 %v535
        %v584 = vunpack.c.l.b16 %v536
        %v585 = vunpack.c.l.b16 %v537
        %v586 = vunpack.c.l.b16 %v538
        %v587 = vunpack.c.l.b16 %v539
        %v588 = vunpack.c.l.b16 %v540
        %v589 = vunpack.c.l.b16 %v541
        %v590 = vunpack.c.l.b16 %v542
        %v591 = vunpack.c.l.b16 %v543
        %v592 = vunpack.c.l.b16 %v544
        %v593 = vpack.c.b16 %v578, %v577
        %v594 = vpack.c.b16 %v580, %v579
        %v595 = vpack.c.b16 %v582, %v581
        %v596 = vpack.c.b16 %v584, %v583
        %v597 = vpack.c.b16 %v586, %v585
        %v598 = vpack.c.b16 %v588, %v587
        %v599 = vpack.c.b16 %v590, %v589
        %v600 = vpack.c.b16 %v592, %v591
        %v625 = vunpack.c.l.b16 %v545
        %v626 = vunpack.c.l.b16 %v546
        %v627 = vunpack.c.l.b16 %v547
        %v628 = vunpack.c.l.b16 %v548
        %v629 = vunpack.c.l.b16 %v549
        %v630 = vunpack.c.l.b16 %v550
        %v631 = vunpack.c.l.b16 %v551
        %v632 = vunpack.c.l.b16 %v552
        %v633 = vunpack.c.l.b16 %v553
        %v634 = vunpack.c.l.b16 %v554
        %v635 = vunpack.c.l.b16 %v555
        %v636 = vunpack.c.l.b16 %v556
        %v637 = vunpack.c.l.b16 %v557
        %v638 = vunpack.c.l.b16 %v558
        %v639 = vunpack.c.l.b16 %v559
        %v640 = vunpack.c.l.b16 %v560
        %v641 = vpack.c.b16 %v626, %v625
        %v642 = vpack.c.b16 %v628, %v627
        %v643 = vpack.c.b16 %v630, %v629
        %v644 = vpack.c.b16 %v632, %v631
        %v645 = vpack.c.b16 %v634, %v633
        %v646 = vpack.c.b16 %v636, %v635
        %v647 = vpack.c.b16 %v638, %v637
        %v648 = vpack.c.b16 %v640, %v639
        %657 = vmatpush.bf16.msra.mxu0 %v648
        %658 = vmatpush.bf16.msra.mxu0 %v647
        %659 = vmatpush.bf16.msra.mxu0 %v646
        %660 = vmatpush.bf16.msra.mxu0 %v645
        %661 = vmatpush.bf16.msra.mxu0 %v644
        %662 = vmatpush.bf16.msra.mxu0 %v643
        %663 = vmatpush.bf16.msra.mxu0 %v642
        %664 = vmatpush.bf16.msra.mxu0 %v641
        %665 = vmatmul.bf16.gmra.mxu0 %v593
        %v666 = vpop.f32.mrf.mxu0
        %v667 = vadd.f32 0.0, %v666
        %v668 = vpop.f32.mrf.mxu0
        %v669 = vadd.f32 0.0, %v668
        %670 = vmatmul.bf16.gmra.mxu0 %v594
        %v671 = vpop.f32.mrf.mxu0
        %v672 = vadd.f32 0.0, %v671
        %v673 = vpop.f32.mrf.mxu0
        %v674 = vadd.f32 0.0, %v673
        %675 = vmatmul.bf16.gmra.mxu0 %v595
        %v676 = vpop.f32.mrf.mxu0
        %v677 = vadd.f32 0.0, %v676
        %v678 = vpop.f32.mrf.mxu0
        %v679 = vadd.f32 0.0, %v678
        %680 = vmatmul.bf16.gmra.mxu0 %v596
        %v681 = vpop.f32.mrf.mxu0
        %v682 = vadd.f32 0.0, %v681
        %v683 = vpop.f32.mrf.mxu0
        %v684 = vadd.f32 0.0, %v683
        %685 = vmatmul.bf16.gmra.mxu0 %v597
        %v686 = vpop.f32.mrf.mxu0
        %v687 = vadd.f32 0.0, %v686
        %v688 = vpop.f32.mrf.mxu0
        %v689 = vadd.f32 0.0, %v688
        %690 = vmatmul.bf16.gmra.mxu0 %v598
        %v691 = vpop.f32.mrf.mxu0
        %v692 = vadd.f32 0.0, %v691
        %v693 = vpop.f32.mrf.mxu0
        %v694 = vadd.f32 0.0, %v693
        %695 = vmatmul.bf16.gmra.mxu0 %v599
        %v696 = vpop.f32.mrf.mxu0
        %v697 = vadd.f32 0.0, %v696
        %v698 = vpop.f32.mrf.mxu0
        %v699 = vadd.f32 0.0, %v698
        %700 = vmatmul.bf16.gmra.mxu0 %v600
        %v701 = vpop.f32.mrf.mxu0
        %v702 = vadd.f32 0.0, %v701
        %v703 = vpop.f32.mrf.mxu0
        %v704 = vadd.f32 0.0, %v703
        %705 = vdwg.mxu0
        %v706 = vpack.c.bf16 %v669, %v667
        %v707 = vpack.c.bf16 %v674, %v672
        %v708 = vpack.c.bf16 %v679, %v677
        %v709 = vpack.c.bf16 %v684, %v682
        %v710 = vpack.c.bf16 %v689, %v687
        %v711 = vpack.c.bf16 %v694, %v692
        %v712 = vpack.c.bf16 %v699, %v697
        %v713 = vpack.c.bf16 %v704, %v702
        %v714 = vld [vmem:[%s423] sm:$0xf]
        %v715 = vld [vmem:[%s423 + $0x4] sm:$0xf]
        %v716 = vld [vmem:[%s423 + $0x8] sm:$0xf]
        %v717 = vld [vmem:[%s423 + $0xc] sm:$0xf]
        %v718 = vld [vmem:[%s423 + $0x10] sm:$0xf]
        %v719 = vld [vmem:[%s423 + $0x14] sm:$0xf]
        %v720 = vld [vmem:[%s423 + $0x18] sm:$0xf]
        %v721 = vld [vmem:[%s423 + $0x1c] sm:$0xf]
        %v722 = vld [vmem:[%s423 + $0x20] sm:$0xf]
        %v723 = vld [vmem:[%s423 + $0x24] sm:$0xf]
        %v724 = vld [vmem:[%s423 + $0x28] sm:$0xf]
        %v725 = vld [vmem:[%s423 + $0x2c] sm:$0xf]
        %v726 = vld [vmem:[%s423 + $0x30] sm:$0xf]
        %v727 = vld [vmem:[%s423 + $0x34] sm:$0xf]
        %v728 = vld [vmem:[%s423 + $0x38] sm:$0xf]
        %v729 = vld [vmem:[%s423 + $0x3c] sm:$0xf]
        %v730 = vld [vmem:[%s492] sm:$0x1]
        %v732 = vperm.slane %v730, 0
        %v750 = vunpack.c.l.b16 %v714
        %v751 = vunpack.c.l.b16 %v715
        %v752 = vunpack.c.l.b16 %v716
        %v753 = vunpack.c.l.b16 %v717
        %v754 = vunpack.c.l.b16 %v718
        %v755 = vunpack.c.l.b16 %v719
        %v756 = vunpack.c.l.b16 %v720
        %v757 = vunpack.c.l.b16 %v721
        %v758 = vunpack.c.l.b16 %v722
        %v759 = vunpack.c.l.b16 %v723
        %v760 = vunpack.c.l.b16 %v724
        %v761 = vunpack.c.l.b16 %v725
        %v762 = vunpack.c.l.b16 %v726
        %v763 = vunpack.c.l.b16 %v727
        %v764 = vunpack.c.l.b16 %v728
        %v765 = vunpack.c.l.b16 %v729
        %v766 = vpack.c.b16 %v751, %v750
        %v767 = vpack.c.b16 %v753, %v752
        %v768 = vpack.c.b16 %v755, %v754
        %v769 = vpack.c.b16 %v757, %v756
        %v770 = vpack.c.b16 %v759, %v758
        %v771 = vpack.c.b16 %v761, %v760
        %v772 = vpack.c.b16 %v763, %v762
        %v773 = vpack.c.b16 %v765, %v764
        %782 = vmatpush.bf16.msra.mxu0 %v773
        %783 = vmatpush.bf16.msra.mxu0 %v772
        %784 = vmatpush.bf16.msra.mxu0 %v771
        %785 = vmatpush.bf16.msra.mxu0 %v770
        %786 = vmatpush.bf16.msra.mxu0 %v769
        %787 = vmatpush.bf16.msra.mxu0 %v768
        %788 = vmatpush.bf16.msra.mxu0 %v767
        %789 = vmatpush.bf16.msra.mxu0 %v766
        %790 = vmatmul.bf16.gmra.mxu0 %v706
        %v791 = vpop.f32.mrf.mxu0
        %v792 = vadd.f32 %v732, %v791
        %v793 = vpop.f32.mrf.mxu0
        %v794 = vadd.f32 %v732, %v793
        %795 = vmatmul.bf16.gmra.mxu0 %v707
        %v796 = vpop.f32.mrf.mxu0
        %v797 = vadd.f32 %v732, %v796
        %v798 = vpop.f32.mrf.mxu0
        %v799 = vadd.f32 %v732, %v798
        %800 = vmatmul.bf16.gmra.mxu0 %v708
        %v801 = vpop.f32.mrf.mxu0
        %v802 = vadd.f32 %v732, %v801
        %v803 = vpop.f32.mrf.mxu0
        %v804 = vadd.f32 %v732, %v803
        %805 = vmatmul.bf16.gmra.mxu0 %v709
        %v806 = vpop.f32.mrf.mxu0
        %v807 = vadd.f32 %v732, %v806
        %v808 = vpop.f32.mrf.mxu0
        %v809 = vadd.f32 %v732, %v808
        %810 = vmatmul.bf16.gmra.mxu0 %v710
        %v811 = vpop.f32.mrf.mxu0
        %v812 = vadd.f32 %v732, %v811
        %v813 = vpop.f32.mrf.mxu0
        %v814 = vadd.f32 %v732, %v813
        %815 = vmatmul.bf16.gmra.mxu0 %v711
        %v816 = vpop.f32.mrf.mxu0
        %v817 = vadd.f32 %v732, %v816
        %v818 = vpop.f32.mrf.mxu0
        %v819 = vadd.f32 %v732, %v818
        %820 = vmatmul.bf16.gmra.mxu0 %v712
        %v821 = vpop.f32.mrf.mxu0
        %v822 = vadd.f32 %v732, %v821
        %v823 = vpop.f32.mrf.mxu0
        %v824 = vadd.f32 %v732, %v823
        %825 = vmatmul.bf16.gmra.mxu0 %v713
        %v826 = vpop.f32.mrf.mxu0
        %v827 = vadd.f32 %v732, %v826
        %v828 = vpop.f32.mrf.mxu0
        %v829 = vadd.f32 %v732, %v828
        %830 = vdwg.mxu0
        %v831 = vmax.f32 %v792, 0.0
        %v832 = vmax.f32 %v794, 0.0
        %v833 = vmax.f32 %v797, 0.0
        %v834 = vmax.f32 %v799, 0.0
        %v835 = vmax.f32 %v802, 0.0
        %v836 = vmax.f32 %v804, 0.0
        %v837 = vmax.f32 %v807, 0.0
        %v838 = vmax.f32 %v809, 0.0
        %v839 = vmax.f32 %v812, 0.0
        %v840 = vmax.f32 %v814, 0.0
        %v841 = vmax.f32 %v817, 0.0
        %v842 = vmax.f32 %v819, 0.0
        %v843 = vmax.f32 %v822, 0.0
        %v844 = vmax.f32 %v824, 0.0
        %v845 = vmax.f32 %v827, 0.0
        %v846 = vmax.f32 %v829, 0.0
        %v847 = vpack.c.bf16 %v832, %v831
        %v848 = vpack.c.bf16 %v834, %v833
        %v849 = vpack.c.bf16 %v836, %v835
        %v850 = vpack.c.bf16 %v838, %v837
        %v851 = vpack.c.bf16 %v840, %v839
        %v852 = vpack.c.bf16 %v842, %v841
        %v853 = vpack.c.bf16 %v844, %v843
        %v854 = vpack.c.bf16 %v846, %v845
        %v855 = vld [vmem:[%s433] sm:$0xf]
        %v856 = vld [vmem:[%s433 + $0x4] sm:$0xf]
        %v857 = vld [vmem:[%s433 + $0x8] sm:$0xf]
        %v858 = vld [vmem:[%s433 + $0xc] sm:$0xf]
        %v859 = vld [vmem:[%s433 + $0x10] sm:$0xf]
        %v860 = vld [vmem:[%s433 + $0x14] sm:$0xf]
        %v861 = vld [vmem:[%s433 + $0x18] sm:$0xf]
        %v862 = vld [vmem:[%s433 + $0x1c] sm:$0xf]
        %v863 = vld [vmem:[%s433 + $0x20] sm:$0xf]
        %v864 = vld [vmem:[%s433 + $0x24] sm:$0xf]
        %v865 = vld [vmem:[%s433 + $0x28] sm:$0xf]
        %v866 = vld [vmem:[%s433 + $0x2c] sm:$0xf]
        %v867 = vld [vmem:[%s433 + $0x30] sm:$0xf]
        %v868 = vld [vmem:[%s433 + $0x34] sm:$0xf]
        %v869 = vld [vmem:[%s433 + $0x38] sm:$0xf]
        %v870 = vld [vmem:[%s433 + $0x3c] sm:$0xf]
        %v871 = vld [vmem:[%s442] sm:$0x1]
        %v873 = vperm.slane %v871, 0
        %v891 = vunpack.c.l.b16 %v855
        %v892 = vunpack.c.l.b16 %v856
        %v893 = vunpack.c.l.b16 %v857
        %v894 = vunpack.c.l.b16 %v858
        %v895 = vunpack.c.l.b16 %v859
        %v896 = vunpack.c.l.b16 %v860
        %v897 = vunpack.c.l.b16 %v861
        %v898 = vunpack.c.l.b16 %v862
        %v899 = vunpack.c.l.b16 %v863
        %v900 = vunpack.c.l.b16 %v864
        %v901 = vunpack.c.l.b16 %v865
        %v902 = vunpack.c.l.b16 %v866
        %v903 = vunpack.c.l.b16 %v867
        %v904 = vunpack.c.l.b16 %v868
        %v905 = vunpack.c.l.b16 %v869
        %v906 = vunpack.c.l.b16 %v870
        %v907 = vpack.c.b16 %v892, %v891
        %v908 = vpack.c.b16 %v894, %v893
        %v909 = vpack.c.b16 %v896, %v895
        %v910 = vpack.c.b16 %v898, %v897
        %v911 = vpack.c.b16 %v900, %v899
        %v912 = vpack.c.b16 %v902, %v901
        %v913 = vpack.c.b16 %v904, %v903
        %v914 = vpack.c.b16 %v906, %v905
        %923 = vmatpush.bf16.msra.mxu0 %v914
        %924 = vmatpush.bf16.msra.mxu0 %v913
        %925 = vmatpush.bf16.msra.mxu0 %v912
        %926 = vmatpush.bf16.msra.mxu0 %v911
        %927 = vmatpush.bf16.msra.mxu0 %v910
        %928 = vmatpush.bf16.msra.mxu0 %v909
        %929 = vmatpush.bf16.msra.mxu0 %v908
        %930 = vmatpush.bf16.msra.mxu0 %v907
        %931 = vmatmul.bf16.gmra.mxu0 %v847
        %v932 = vpop.f32.mrf.mxu0
        %v933 = vadd.f32 %v873, %v932
        %v934 = vpop.f32.mrf.mxu0
        %v935 = vadd.f32 %v873, %v934
        %936 = vmatmul.bf16.gmra.mxu0 %v848
        %v937 = vpop.f32.mrf.mxu0
        %v938 = vadd.f32 %v873, %v937
        %v939 = vpop.f32.mrf.mxu0
        %v940 = vadd.f32 %v873, %v939
        %941 = vmatmul.bf16.gmra.mxu0 %v849
        %v942 = vpop.f32.mrf.mxu0
        %v943 = vadd.f32 %v873, %v942
        %v944 = vpop.f32.mrf.mxu0
        %v945 = vadd.f32 %v873, %v944
        %946 = vmatmul.bf16.gmra.mxu0 %v850
        %v947 = vpop.f32.mrf.mxu0
        %v948 = vadd.f32 %v873, %v947
        %v949 = vpop.f32.mrf.mxu0
        %v950 = vadd.f32 %v873, %v949
        %951 = vmatmul.bf16.gmra.mxu0 %v851
        %v952 = vpop.f32.mrf.mxu0
        %v953 = vadd.f32 %v873, %v952
        %v954 = vpop.f32.mrf.mxu0
        %v955 = vadd.f32 %v873, %v954
        %956 = vmatmul.bf16.gmra.mxu0 %v852
        %v957 = vpop.f32.mrf.mxu0
        %v958 = vadd.f32 %v873, %v957
        %v959 = vpop.f32.mrf.mxu0
        %v960 = vadd.f32 %v873, %v959
        %961 = vmatmul.bf16.gmra.mxu0 %v853
        %v962 = vpop.f32.mrf.mxu0
        %v963 = vadd.f32 %v873, %v962
        %v964 = vpop.f32.mrf.mxu0
        %v965 = vadd.f32 %v873, %v964
        %966 = vmatmul.bf16.gmra.mxu0 %v854
        %v967 = vpop.f32.mrf.mxu0
        %v968 = vadd.f32 %v873, %v967
        %v969 = vpop.f32.mrf.mxu0
        %v970 = vadd.f32 %v873, %v969
        %971 = vdwg.mxu0
        %p972 = scmp.eq.s32.totalorder %s29, 2
        %v973 = vmax.f32 %v933, 0.0
        %v974 = vmax.f32 %v935, 0.0
        %v975 = vmax.f32 %v938, 0.0
        %v976 = vmax.f32 %v940, 0.0
        %v977 = vmax.f32 %v943, 0.0
        %v978 = vmax.f32 %v945, 0.0
        %v979 = vmax.f32 %v948, 0.0
        %v980 = vmax.f32 %v950, 0.0
        %v981 = vmax.f32 %v953, 0.0
        %v982 = vmax.f32 %v955, 0.0
        %v983 = vmax.f32 %v958, 0.0
        %v984 = vmax.f32 %v960, 0.0
        %v985 = vmax.f32 %v963, 0.0
        %v986 = vmax.f32 %v965, 0.0
        %v987 = vmax.f32 %v968, 0.0
        %v988 = vmax.f32 %v970, 0.0
        %s989 = scalar_select %p972, 1, 0
        %v990 = vstv %s989
        %vm991 = vcmp.eq.s32.totalorder %v990, 1
        %v992 = vsel %vm991, %v933, %v973
        %v993 = vsel %vm991, %v935, %v974
        %v994 = vsel %vm991, %v938, %v975
        %v995 = vsel %vm991, %v940, %v976
        %v996 = vsel %vm991, %v943, %v977
        %v997 = vsel %vm991, %v945, %v978
        %v998 = vsel %vm991, %v948, %v979
        %v999 = vsel %vm991, %v950, %v980
        %v1000 = vsel %vm991, %v953, %v981
        %v1001 = vsel %vm991, %v955, %v982
        %v1002 = vsel %vm991, %v958, %v983
        %v1003 = vsel %vm991, %v960, %v984
        %v1004 = vsel %vm991, %v963, %v985
        %v1005 = vsel %vm991, %v965, %v986
        %v1006 = vsel %vm991, %v968, %v987
        %v1007 = vsel %vm991, %v970, %v988
        %v1008 = vpack.c.bf16 %v992, %v992
        %v1009 = vpack.c.bf16 %v993, %v993
        %v1010 = vpack.c.bf16 %v994, %v994
        %v1011 = vpack.c.bf16 %v995, %v995
        %v1012 = vpack.c.bf16 %v996, %v996
        %v1013 = vpack.c.bf16 %v997, %v997
        %v1014 = vpack.c.bf16 %v998, %v998
        %v1015 = vpack.c.bf16 %v999, %v999
        %v1016 = vpack.c.bf16 %v1000, %v1000
        %v1017 = vpack.c.bf16 %v1001, %v1001
        %v1018 = vpack.c.bf16 %v1002, %v1002
        %v1019 = vpack.c.bf16 %v1003, %v1003
        %v1020 = vpack.c.bf16 %v1004, %v1004
        %v1021 = vpack.c.bf16 %v1005, %v1005
        %v1022 = vpack.c.bf16 %v1006, %v1006
        %v1023 = vpack.c.bf16 %v1007, %v1007
        %1024 = vst [vmem:[#allocation2] sm:$0xf] %v1008
        %1025 = vst [vmem:[#allocation2 + $0x4] sm:$0xf] %v1009
        %1026 = vst [vmem:[#allocation2 + $0x8] sm:$0xf] %v1010
        %1027 = vst [vmem:[#allocation2 + $0xc] sm:$0xf] %v1011
        %1028 = vst [vmem:[#allocation2 + $0x10] sm:$0xf] %v1012
        %1029 = vst [vmem:[#allocation2 + $0x14] sm:$0xf] %v1013
        %1030 = vst [vmem:[#allocation2 + $0x18] sm:$0xf] %v1014
        %1031 = vst [vmem:[#allocation2 + $0x1c] sm:$0xf] %v1015
        %1032 = vst [vmem:[#allocation2 + $0x20] sm:$0xf] %v1016
        %1033 = vst [vmem:[#allocation2 + $0x24] sm:$0xf] %v1017
        %1034 = vst [vmem:[#allocation2 + $0x28] sm:$0xf] %v1018
        %1035 = vst [vmem:[#allocation2 + $0x2c] sm:$0xf] %v1019
        %1036 = vst [vmem:[#allocation2 + $0x30] sm:$0xf] %v1020
        %1037 = vst [vmem:[#allocation2 + $0x34] sm:$0xf] %v1021
        %1038 = vst [vmem:[#allocation2 + $0x38] sm:$0xf] %v1022
        %1039 = vst [vmem:[#allocation2 + $0x3c] sm:$0xf] %v1023
        // Predicated region
        $region89: #{tpu_custom_call.1} parent=55 // pred_check
          %p1040 = pneg %p972
        $region90: #{tpu_custom_call.1} parent=55 // pred_check_branch
          %1042 = sbr.rel (%p1040) target = $region92
        $region91: #{tpu_custom_call.1} parent=55 // pred_region
          %v1043 = vld [vmem:[#allocation8] sm:$0xf]
          %v1044 = vpack.c.bf16 %v935, %v933
          %v1045 = vpack.c.bf16 %v940, %v938
          %v1046 = vpack.c.bf16 %v945, %v943
          %v1047 = vpack.c.bf16 %v950, %v948
          %v1048 = vpack.c.bf16 %v955, %v953
          %v1049 = vpack.c.bf16 %v960, %v958
          %v1050 = vpack.c.bf16 %v965, %v963
          %v1051 = vpack.c.bf16 %v970, %v968
          %1052 = vmatpush.bf16.msra.mxu0 %v1051
          %1053 = vmatpush.bf16.msra.mxu0 %v1050
          %1054 = vmatpush.bf16.msra.mxu0 %v1049
          %1055 = vmatpush.bf16.msra.mxu0 %v1048
          %1056 = vmatpush.bf16.msra.mxu0 %v1047
          %1057 = vmatpush.bf16.msra.mxu0 %v1046
          %1058 = vmatpush.bf16.msra.mxu0 %v1045
          %1059 = vmatpush.bf16.msra.mxu0 %v1044
          %1060 = vmatmul.bf16.gmra.mxu0 %v1043
          %v1061 = vpop.f32.mrf.mxu0
          %v1062 = vadd.f32 0.0, %v1061
          %v1063 = vpop.f32.mrf.mxu0
          %1064 = vdwg.mxu0
          %v1065 = vld [vmem:[#allocation14] sm:$0xff]
          %v1066 = vld [vmem:[#allocation14 + $0x8] sm:$0xff]
          %v1067 = vld [vmem:[#allocation14 + $0x10] sm:$0xff]
          %v1068 = vld [vmem:[#allocation14 + $0x18] sm:$0xff]
          %v1069 = vld [vmem:[#allocation14 + $0x20] sm:$0xff]
          %v1070 = vld [vmem:[#allocation14 + $0x28] sm:$0xff]
          %v1071 = vld [vmem:[#allocation14 + $0x30] sm:$0xff]
          %v1072 = vld [vmem:[#allocation14 + $0x38] sm:$0xff]
          %v1073 = vld [vmem:[#allocation14 + $0x40] sm:$0xff]
          %v1074 = vld [vmem:[#allocation14 + $0x48] sm:$0xff]
          %v1075 = vld [vmem:[#allocation14 + $0x50] sm:$0xff]
          %v1076 = vld [vmem:[#allocation14 + $0x58] sm:$0xff]
          %v1077 = vld [vmem:[#allocation14 + $0x60] sm:$0xff]
          %v1078 = vld [vmem:[#allocation14 + $0x68] sm:$0xff]
          %v1079 = vld [vmem:[#allocation14 + $0x70] sm:$0xff]
          %v1080 = vld [vmem:[#allocation14 + $0x78] sm:$0xff]
          %v1081 = vld [vmem:[%s8] sm:$0x1]
          %v1083 = vperm.slane %v1081, 0
          %1085 = vmatpush.msra.mxu0 %v1080
          %1086 = vmatpush.msra.mxu0 %v1079
          %1087 = vmatpush.msra.mxu0 %v1078
          %1088 = vmatpush.msra.mxu0 %v1077
          %1089 = vmatpush.msra.mxu0 %v1076
          %1090 = vmatpush.msra.mxu0 %v1075
          %1091 = vmatpush.msra.mxu0 %v1074
          %1092 = vmatpush.msra.mxu0 %v1073
          %1093 = vmatpush.msra.mxu0 %v1072
          %1094 = vmatpush.msra.mxu0 %v1071
          %1095 = vmatpush.msra.mxu0 %v1070
          %1096 = vmatpush.msra.mxu0 %v1069
          %1097 = vmatpush.msra.mxu0 %v1068
          %1098 = vmatpush.msra.mxu0 %v1067
          %1099 = vmatpush.msra.mxu0 %v1066
          %1100 = vmatpush.msra.mxu0 %v1065
          %1101 = vmatmul.f32.gmra.mxu0 %v1062
          %v1102 = vpop.f32.mrf.mxu0
          %v1103 = vadd.f32 %v1083, %v1102
          %1104 = vdwg.mxu0
          %1105 = vst [vmem:[#allocation15] sm:$0xff] %v1103
        $region92: #{tpu_custom_call.1} parent=55 // pred_fallthru
          _
        // Predicated region
        $region93: #{tpu_custom_call.1} parent=55 // pred_check
          %p1106 = pneg %p251
        $region94: #{tpu_custom_call.1} parent=55 // pred_check_branch
          %1108 = sbr.rel (%p1106) target = $region96
        $region95: #{tpu_custom_call.1} parent=55 // pred_region
          %1110 = vsyncadd [#allocation5], 0
          %s1112 = sshll.u32 [#allocation15], 4
          %s1113 = int_to_ptr.vmem [resolvable:$true] %s1112
          %s1114 = sshll.u32 %s9, 4
          %s1115 = int_to_ptr.hbm [resolvable:$true] %s1114
          %1117 = dma.vmem_to_hbm [thread:$0]  %s1113, 128, %s1115, [#allocation5]
        $region96: #{tpu_custom_call.1} parent=55 // pred_fallthru
          _
        // Predicated region
        $region97: #{tpu_custom_call.1} parent=55 // pred_check
          %p1118 = pneg %p251
        $region98: #{tpu_custom_call.1} parent=55 // pred_check_branch
          %1120 = sbr.rel (%p1118) target = $region100
        $region99: #{tpu_custom_call.1} parent=55 // pred_region
          %1122 = dma.done [#allocation5], 128
        $region100: #{tpu_custom_call.1} parent=55 // pred_fallthru
          _
      $region56: #{tpu_custom_call.1} parent=5 // pred_fallthru
        _
      %p1123 = scmp.le.s32.totalorder 2, %s24
      // Predicated region
      $region101: #{tpu_custom_call.1} parent=5 // pred_check
        %p1124 = pneg %p1123
      $region102: #{tpu_custom_call.1} parent=5 // pred_check_branch
        %1126 = sbr.rel (%p1124) target = $region104
      $region103: #{tpu_custom_call.1} parent=5 // pred_region
        %s1127 = ssub.s32 %s24, 2
      $region104: #{tpu_custom_call.1} parent=5 // pred_fallthru
        _
    $region6: #{tpu_custom_call.1} parent=1 // loop_footer
      %s28 = sadd.s32 1, %s24
    $region7: #{tpu_custom_call.1} parent=1 // loop_footer_branch
      %23 = sbr.rel target = $region3
    $region8: #{tpu_custom_call.1} parent=1 // loop_exit
      _
    %1128 = vsyncpa [#allocation4], 1
    %s1129 = scalar_lea.sflag [#allocation4], 1
    %1130 = vsyncpa %s1129, 1
    %1131 = vsyncpa [#allocation7], 1
    %1132 = vsyncpa [#allocation10], 1
    %s1133 = scalar_lea.sflag [#allocation10], 1
    %1134 = vsyncpa %s1133, 1
    %1135 = vsyncpa [#allocation13], 1
    %s1136 = scalar_lea.sflag [#allocation13], 1
    %1137 = vsyncpa %s1136, 1
    %1138 = vsyncpa [#allocation5], 1
    %s1139 = scalar_lea.sflag [#allocation5], 1
    %1140 = vsyncpa %s1139, 1

</llo_original>
